<compile_context>
chip_gen: v5e
topology: v5e:2x2
jax: 0.10.0
libtpu: 0.0.40
codegen_flags: <defaults>
</compile_context>

<pallas_src>
import functools

import jax
import jax.numpy as jnp
from jax import lax
from jax.experimental import pallas as pl
from jax.experimental.pallas import tpu as pltpu

_LANES = 128
_SUBLANES = 8
_MAX_TILE_M_MEAN = 8192   # 4 MiB per f32 input tile (2 input streams)
_MAX_TILE_M_SUM = 4096    # 2 MiB per f32 tile (3 streams: x, target, out)


def _row_quantum(dtype):
    """Sublane packing granularity in rows: 8 (f32), 16 (bf16), 32 (int8/fp8)."""
    itemsize = max(jnp.dtype(dtype).itemsize, 1)
    return _SUBLANES * max(1, 4 // itemsize)


def _as_slab(a, row_quantum):
    """Flatten (row-major, torch.flatten order) into a lane-dense (rows, 128) slab.

    The pad is only materialized when numel is not a multiple of
    row_quantum * 128; in the common aligned case the reshape is free metadata.
    """
    flat = a.reshape(-1)
    n = flat.shape[0]
    rows = -(-n // _LANES)
    rows = -(-rows // row_quantum) * row_quantum
    padded = rows * _LANES
    if padded != n:
        # TODO(synk): the non-aligned case pays one HBM copy here; an in-kernel
        # flat-index mask over a 1-D slab would remove it.
        flat = jnp.pad(flat, (0, padded - n))   # zeros -> |0 - 0| adds nothing
    return flat.reshape(rows, _LANES), n, rows


def _abs_diff_sum_kernel(x_ref, t_ref, o_ref, *, tile_m, tiles_per_core,
                         mask_start, valid_rows, mask_needed):
    c = pl.program_id(0)   # "parallel" (core) axis
    i = pl.program_id(1)   # "arbitrary" reduction axis (last)

    @pl.when(i == 0)
    def _():
        o_ref[...] = jnp.zeros_like(o_ref)

    d = jnp.abs(x_ref[...].astype(jnp.float32) - t_ref[...].astype(jnp.float32))

    def _accumulate(vals):
        # Lane-parallel fold of the tile's rows onto one (8, 128) vreg block.
        o_ref[...] += vals.reshape(tile_m // _SUBLANES, _SUBLANES, _LANES).sum(
            axis=0, keepdims=True)

    if mask_needed:
        tile_idx = c * tiles_per_core + i          # unclamped logical tile idx

        @pl.when(tile_idx < mask_start)            # hot path: no mask work
        def _():
            _accumulate(d)

        @pl.when(tile_idx >= mask_start)           # ragged tail / clamped dup
        def _():
            row = tile_idx * tile_m + lax.broadcasted_iota(jnp.int32, d.shape, 0)
            # Select (not multiply) so stale/garbage rows cannot propagate NaN.
            _accumulate(jnp.where(row < valid_rows, d, 0.0))
    else:
        _accumulate(d)


def _abs_diff_scale_kernel(inv_b_ref, x_ref, t_ref, o_ref):
    d = jnp.abs(x_ref[...].astype(jnp.float32) - t_ref[...].astype(jnp.float32))
    o_ref[...] = (d * inv_b_ref[0, 0]).astype(o_ref.dtype)


@functools.partial(jax.jit, static_argnames=("reduction",))
def con_loss(x, target, b, reduction="mean"):
    """JAX/Pallas equivalent of the PyTorch con_loss.forward."""
    if reduction not in ("sum", "mean"):
        raise KeyError(reduction)

    row_q = max(_row_quantum(x.dtype), _row_quantum(target.dtype))
    x2, n, rows = _as_slab(x, row_q)
    t2, _, _ = _as_slab(target, row_q)
    in_itemsize = jnp.dtype(x.dtype).itemsize

    if reduction == "mean":
        tile_m = min(_MAX_TILE_M_MEAN, rows)
        num_blocks = -(-rows // tile_m)

        # 2-way leading split feeds both v7x TensorCores; the size-1 axis is a
        # no-op on single-TC v5e/v6e.  Skip the split entirely for one tile so
        # small inputs never double their HBM traffic.
        num_cores = 2 if num_blocks >= 2 else 1
        tiles_per_core = -(-num_blocks // num_cores)

        # Only the ragged last tile and the (at most one) clamped duplicate
        # tile ever need masking.
        mask_start = num_blocks - 1 if rows % tile_m != 0 else num_blocks
        mask_needed = (num_cores * tiles_per_core - 1) >= mask_start

        def in_map(c, i):
            # Clamp the (at most one) out-of-range tile onto the last valid
            # block; its contribution is zeroed in-kernel.
            return (jnp.minimum(c * tiles_per_core + i, num_blocks - 1), 0)

        kernel = functools.partial(
            _abs_diff_sum_kernel, tile_m=tile_m, tiles_per_core=tiles_per_core,
            mask_start=mask_start, valid_rows=rows, mask_needed=mask_needed)

        tile_in = tile_m * _LANES * in_itemsize
        tile_f32 = tile_m * _LANES * 4
        vmem_limit = int(min(max(2 * 2 * tile_in + 2 * tile_f32 + (2 << 20),
                                 16 << 20), 56 << 20))

        partials = pl.pallas_call(
            kernel,
            out_shape=jax.ShapeDtypeStruct((num_cores, _SUBLANES, _LANES),
                                           jnp.float32),
            grid_spec=pltpu.PrefetchScalarGridSpec(
                num_scalar_prefetch=0,
                grid=(num_cores, tiles_per_core),
                in_specs=[pl.BlockSpec((tile_m, _LANES), in_map),
                          pl.BlockSpec((tile_m, _LANES), in_map)],
                out_specs=pl.BlockSpec((1, _SUBLANES, _LANES),
                                       lambda c, i: (c, 0, 0)),
            ),
            compiler_params=pltpu.CompilerParams(
                # TODO(synk): on v7x verify "parallel" shards the leading axis
                # across both TensorCores; if not, switch to pltpu.CORE_PARALLEL.
                dimension_semantics=("parallel", "arbitrary"),
                vmem_limit_bytes=vmem_limit),
            cost_estimate=pl.CostEstimate(
                flops=3 * n, transcendentals=0,
                bytes_accessed=2 * n * in_itemsize),
        )(x2, t2)

        total = jnp.sum(partials)                      # tiny cross-lane reduce
        mean = total / jnp.float32(n)                  # divide by original numel
        return (mean / jnp.asarray(b, jnp.float32)).astype(x.dtype)

    else:  # 'sum': elementwise |x - target| / b, same shape as x
        tile_m = min(_MAX_TILE_M_SUM, rows)
        num_blocks = -(-rows // tile_m)

        # b may be traced under jit -> no Python float() conversion.
        inv_b = (jnp.float32(1.0) / jnp.asarray(b, jnp.float32)).reshape(1, 1)

        tile_in = tile_m * _LANES * in_itemsize
        tile_f32 = tile_m * _LANES * 4
        vmem_limit = int(min(max(3 * 2 * tile_in + 2 * tile_f32 + (2 << 20),
                                 16 << 20), 56 << 20))

        out2 = pl.pallas_call(
            _abs_diff_scale_kernel,
            out_shape=jax.ShapeDtypeStruct((rows, _LANES), x.dtype),
            grid_spec=pltpu.PrefetchScalarGridSpec(
                num_scalar_prefetch=0,
                grid=(num_blocks,),
                in_specs=[
                    pl.BlockSpec(memory_space=pltpu.MemorySpace.SMEM),
                    pl.BlockSpec((tile_m, _LANES), lambda i: (i, 0)),
                    pl.BlockSpec((tile_m, _LANES), lambda i: (i, 0)),
                ],
                out_specs=pl.BlockSpec((tile_m, _LANES), lambda i: (i, 0)),
            ),
            compiler_params=pltpu.CompilerParams(
                dimension_semantics=("parallel",),
                vmem_limit_bytes=vmem_limit),
            cost_estimate=pl.CostEstimate(
                flops=3 * n, transcendentals=0,
                bytes_accessed=3 * n * in_itemsize),
        )(inv_b, x2, t2)

        flat = out2.reshape(-1)
        if flat.shape[0] != n:
            flat = flat[:n]   # only in the rare non-aligned case
        return flat.reshape(x.shape)


if __name__ == "__main__":
    key = jax.random.PRNGKey(0)
    kx, kt = jax.random.split(key)

    # Small shapes consistent with an NCHW image tensor.
    x = jax.random.normal(kx, (2, 4, 16, 16), dtype=jnp.float32)
    target = jax.random.normal(kt, (2, 4, 16, 16), dtype=jnp.float32)
    b = jnp.float32(2.0)  # like the PyTorch buffer self.b, traced under jit

    # 'mean' reduction path (default) — scalar loss.
    loss = jax.block_until_ready(con_loss(x, target, b, reduction="mean"))
    ref = jnp.mean(jnp.abs(x - target)) / b
    assert jnp.allclose(loss, ref, atol=1e-6, rtol=1e-5), (loss, ref)

    # 'sum' reduction path — elementwise |x - target| / b.
    ew = jax.block_until_ready(con_loss(x, target, b, reduction="sum"))
    ref_ew = jnp.abs(x - target) / b
    assert jnp.allclose(ew, ref_ew, atol=1e-6, rtol=1e-5)

    print("KERNEL_OK")
</pallas_src>

<mosaic_0001>
module attributes {stable_mosaic.version = 11 : i64} {
  func.func @_abs_diff_sum_kernel(%arg0: i32, %arg1: i32, %arg2: memref<16x128xf32, #tpu.memory_space<vmem>>, %arg3: memref<16x128xf32, #tpu.memory_space<vmem>>, %arg4: memref<1x8x128xf32, #tpu.memory_space<vmem>>) attributes {dimension_semantics = [#tpu.dimension_semantics<parallel>, #tpu.dimension_semantics<arbitrary>], iteration_bounds = array<i64: 1, 1>, scalar_prefetch = 0 : i64, scratch_operands = 0 : i64, tpu.core_type = #tpu.core_type<tc>, window_params = [{transform_indices = @transform_0, window_bounds = array<i64: 16, 128>}, {transform_indices = @transform_1, window_bounds = array<i64: 16, 128>}, {transform_indices = @transform_2, window_bounds = array<i64: 1, 8, 128>}]} {
    %c0_i32 = arith.constant 0 : i32
    %0 = arith.cmpi eq, %arg1, %c0_i32 : i32
    %1 = arith.extui %0 : i1 to i32
    %c0_i32_0 = arith.constant 0 : i32
    %2 = arith.cmpi ne, %1, %c0_i32_0 : i32
    scf.if %2 {
      %cst_10 = arith.constant 0.000000e+00 : f32
      %13 = vector.broadcast %cst_10 : f32 to vector<1x8x128xf32>
      %c0_11 = arith.constant 0 : index
      %c0_12 = arith.constant 0 : index
      %c0_13 = arith.constant 0 : index
      %14 = vector.load %arg4[%c0_11, %c0_12, %c0_13] : memref<1x8x128xf32, #tpu.memory_space<vmem>>, vector<1x8x128xf32>
      tpu.vector_store %arg4[%c0_11, %c0_12, %c0_13], %13 {strides = array<i32>} : memref<1x8x128xf32, #tpu.memory_space<vmem>>, vector<1x8x128xf32>,
    } else {
    }
    %c0 = arith.constant 0 : index
    %c0_1 = arith.constant 0 : index
    %3 = vector.load %arg2[%c0, %c0_1] : memref<16x128xf32, #tpu.memory_space<vmem>>, vector<16x128xf32>
    %c0_2 = arith.constant 0 : index
    %c0_3 = arith.constant 0 : index
    %4 = vector.load %arg3[%c0_2, %c0_3] : memref<16x128xf32, #tpu.memory_space<vmem>>, vector<16x128xf32>
    %5 = arith.subf %3, %4 : vector<16x128xf32>
    %6 = math.absf %5 : vector<16x128xf32>
    %c0_4 = arith.constant 0 : index
    %c0_5 = arith.constant 0 : index
    %c0_6 = arith.constant 0 : index
    %7 = vector.load %arg4[%c0_4, %c0_5, %c0_6] : memref<1x8x128xf32, #tpu.memory_space<vmem>>, vector<1x8x128xf32>
    %8 = vector.shape_cast %6 : vector<16x128xf32> to vector<2x8x128xf32>
    %cst = arith.constant dense<0.000000e+00> : vector<8x128xf32>
    %9 = vector.multi_reduction <add>, %8, %cst [0] : vector<2x8x128xf32> to vector<8x128xf32>
    %10 = vector.shape_cast %9 : vector<8x128xf32> to vector<1x8x128xf32>
    %11 = arith.addf %7, %10 : vector<1x8x128xf32>
    %c0_7 = arith.constant 0 : index
    %c0_8 = arith.constant 0 : index
    %c0_9 = arith.constant 0 : index
    %12 = vector.load %arg4[%c0_7, %c0_8, %c0_9] : memref<1x8x128xf32, #tpu.memory_space<vmem>>, vector<1x8x128xf32>
    tpu.vector_store %arg4[%c0_7, %c0_8, %c0_9], %11 {strides = array<i32>} : memref<1x8x128xf32, #tpu.memory_space<vmem>>, vector<1x8x128xf32>,
    return
  }
  func.func @transform_0(%arg0: i32, %arg1: i32) -> (i32, i32) {
    %c1_i32 = arith.constant 1 : i32
    %0 = arith.muli %arg0, %c1_i32 : i32
    %1 = arith.addi %0, %arg1 : i32
    %c0_i32 = arith.constant 0 : i32
    %2 = arith.minsi %1, %c0_i32 : i32
    %c0_i32_0 = arith.constant 0 : i32
    %c0_i32_1 = arith.constant 0 : i32
    return %2, %c0_i32_0 : i32, i32
  }
  func.func @transform_1(%arg0: i32, %arg1: i32) -> (i32, i32) {
    %c1_i32 = arith.constant 1 : i32
    %0 = arith.muli %arg0, %c1_i32 : i32
    %1 = arith.addi %0, %arg1 : i32
    %c0_i32 = arith.constant 0 : i32
    %2 = arith.minsi %1, %c0_i32 : i32
    %c0_i32_0 = arith.constant 0 : i32
    %c0_i32_1 = arith.constant 0 : i32
    return %2, %c0_i32_0 : i32, i32
  }
  func.func @transform_2(%arg0: i32, %arg1: i32) -> (i32, i32, i32) {
    %c0_i32 = arith.constant 0 : i32
    %c0_i32_0 = arith.constant 0 : i32
    %c0_i32_1 = arith.constant 0 : i32
    return %arg0, %c0_i32, %c0_i32_0 : i32, i32, i32
  }
}

</mosaic_0001>

<llo_original>
// kernel: con_loss.1
$region0: #{con_loss.1}
  #allocation0 [shape = 'u32[]', space=smem, size = 0x4, offset = 0x4, fixed_abs, tag = 'smem constant byte address 0x4 - core index']
  #allocation1 [shape = 'u32[72,128]{1,0:T(1,128)}', space=vmem, size = 0x9000, scoped, tag = 'internal scratch']
  %s0 = inlined_call_operand.vmem [shape: f32[16,128], index: 0, kind: input, shape index: {}]
  %s1 = inlined_call_operand.vmem [shape: f32[16,128], index: 1, kind: input, shape index: {}]
  %s2 = inlined_call_operand.vmem [shape: f32[1,8,128], index: 2, kind: output, shape index: {}]
  %s3 = sld [smem:[#allocation0]]
  $region22: #{con_loss.1} parent=0
    _
  %s5 = ssub.s32 1, %s3
  %s6 = scalar_select 0, %s5, %s3
  // Predicated region
  $region2: #{con_loss.1} parent=0 // pred_check
    _
  $region3: #{con_loss.1} parent=0 // pred_check_branch
    %8 = sbr.rel (0) target = $region5
  $region4: #{con_loss.1} parent=0 // pred_region
    %s9 = sadd.s32 0, 0
    %p10 = scmp.lt.s32.totalorder %s9, 0
    %s11 = scalar_select %p10, %s9, 0
    %s12 = smul.u32 2, %s11
    %p13 = scmp.lt.s32.totalorder %s12, 1
    %s14 = scalar_select %p13, %s12, 1
    %s15 = smul.addr %s14, 8
    %s16 = scalar_lea.vmem %s0, %s15
    %s17 = sadd.s32 0, 0
    %p18 = scmp.lt.s32.totalorder %s17, 0
    %s19 = scalar_select %p18, %s17, 0
    %s20 = smul.u32 2, %s19
  $region5: #{con_loss.1} parent=0 // pred_fallthru
    _
  // Predicated region
  $region6: #{con_loss.1} parent=0 // pred_check
    _
  $region7: #{con_loss.1} parent=0 // pred_check_branch
    %22 = sbr.rel (0) target = $region9
  $region8: #{con_loss.1} parent=0 // pred_region
    %s23 = sadd.s32 0, 0
    %p24 = scmp.lt.s32.totalorder %s23, 0
    %s25 = scalar_select %p24, %s23, 0
    %s26 = smul.u32 2, %s25
    %p27 = scmp.lt.s32.totalorder %s26, 1
    %s28 = scalar_select %p27, %s26, 1
    %s29 = smul.addr %s28, 8
    %s30 = scalar_lea.vmem %s1, %s29
    %s31 = sadd.s32 0, 0
    %p32 = scmp.lt.s32.totalorder %s31, 0
    %s33 = scalar_select %p32, %s31, 0
    %s34 = smul.u32 2, %s33
  $region9: #{con_loss.1} parent=0 // pred_fallthru
    _
  %s35 = sadd.s32 0, 0
  %p36 = scmp.lt.s32.totalorder %s35, 0
  %s37 = scalar_select %p36, %s35, 0
  %s38 = smul.u32 2, %s37
  %p39 = scmp.lt.s32.totalorder %s38, 1
  %s40 = scalar_select %p39, %s38, 1
  %s41 = smul.addr %s40, 8
  %s42 = scalar_lea.vmem %s0, %s41
  %s43 = sadd.s32 0, 0
  %p44 = scmp.lt.s32.totalorder %s43, 0
  %s45 = scalar_select %p44, %s43, 0
  %s46 = smul.u32 2, %s45
  %p47 = scmp.lt.s32.totalorder %s46, 1
  %s48 = scalar_select %p47, %s46, 1
  %s49 = smul.addr %s48, 8
  %s50 = scalar_lea.vmem %s1, %s49
  %s51 = sadd.s32 0, 0
  %p52 = scmp.lt.s32.totalorder %s51, 0
  %s53 = scalar_select %p52, %s51, 0
  %s54 = smul.u32 2, %s53
  %p55 = scmp.lt.s32.totalorder %s54, 1
  %s56 = scalar_select %p55, %s54, 1
  %s57 = smul.addr %s56, 8
  %s58 = scalar_lea.vmem %s0, %s57
  %s59 = sadd.s32 0, 0
  %p60 = scmp.lt.s32.totalorder %s59, 0
  %s61 = scalar_select %p60, %s59, 0
  %s62 = smul.u32 2, %s61
  %s63 = sadd.s32 0, 0
  %p64 = scmp.lt.s32.totalorder %s63, 0
  %s65 = scalar_select %p64, %s63, 0
  %s66 = smul.u32 2, %s65
  %p67 = scmp.lt.s32.totalorder %s66, 1
  %s68 = scalar_select %p67, %s66, 1
  %s69 = smul.addr %s68, 8
  %s70 = scalar_lea.vmem %s1, %s69
  %s71 = sadd.s32 0, 0
  %p72 = scmp.lt.s32.totalorder %s71, 0
  %s73 = scalar_select %p72, %s71, 0
  %s74 = smul.u32 2, %s73
  %p75 = scmp.eq.s32.totalorder 0, 0
  // Predicated region
  $region10: #{con_loss.1} parent=0 // pred_check
    %p76 = pneg %p75
  $region11: #{con_loss.1} parent=0 // pred_check_branch
    %78 = sbr.rel (%p76) target = $region13
  $region12: #{con_loss.1} parent=0 // pred_region
    %79 = vst [vmem:[%s2] sm:$0xff] 0.0
  $region13: #{con_loss.1} parent=0 // pred_fallthru
    _
  %v80 = vld [vmem:[%s58] sm:$0xff]
  %v81 = vld [vmem:[%s58 + $0x8] sm:$0xff]
  %v82 = vld [vmem:[%s70] sm:$0xff]
  %v83 = vld [vmem:[%s70 + $0x8] sm:$0xff]
  %v84 = vsub.f32 %v80, %v82
  %v85 = vsub.f32 %v81, %v83
  %v86 = vand.u32 2147483647, %v84
  %v87 = vand.u32 2147483647, %v85
  %v88 = vld [vmem:[%s2] sm:$0xff]
  %v89 = vadd.f32 %v86, %v87
  %v90 = vadd.f32 %v88, %v89
  %91 = vst [vmem:[%s2] sm:$0xff] %v90
  // Predicated region
  $region14: #{con_loss.1} parent=0 // pred_check
    _
  $region15: #{con_loss.1} parent=0 // pred_check_branch
    %93 = sbr.rel (0) target = $region17
  $region16: #{con_loss.1} parent=0 // pred_region
    _
  $region17: #{con_loss.1} parent=0 // pred_fallthru
    _
  // Predicated region
  $region18: #{con_loss.1} parent=0 // pred_check
    _
  $region19: #{con_loss.1} parent=0 // pred_check_branch
    %95 = sbr.rel (0) target = $region21
  $region20: #{con_loss.1} parent=0 // pred_region
    _
  $region21: #{con_loss.1} parent=0 // pred_fallthru
    _

</llo_original>
